<compile_context>
chip_gen: v6e
topology: v6e:2x2x1
jax: 0.10.0
libtpu: 0.0.40
codegen_flags: <defaults>
</compile_context>

<pallas_src>
import functools

import jax
import jax.numpy as jnp
import numpy as np
from jax.experimental import pallas as pl
from jax.experimental.pallas import tpu as pltpu

_LANES = 128


def _obs_kernel(x_sm, svT_ref, o_ref):
    """Non-trainable path: range + clock bias only (no MXU, no weights)."""
    sv = svT_ref[...]                               # (3, n_pad)
    dx = x_sm[0] - sv[0:1, :]                       # scalar broadcast (VPU)
    dy = x_sm[2] - sv[1:2, :]
    dz = x_sm[4] - sv[2:3, :]
    rng = jnp.sqrt(dx * dx + dy * dy + dz * dz)     # (1, n_pad), EUP sqrt
    o_ref[...] = (rng + x_sm[6]).astype(o_ref.dtype)


def _obs_kernel_train(dm, x_sm, svT_ref, slab_ref, o_ref):
    """Trainable path: range/clock (VPU+EUP) interleaved with the MLP (MXU)."""
    # --- range / clock path (scalar reads from SMEM, no MXU dependency) ---
    sv = svT_ref[...]                               # (3, n_pad)
    dx = x_sm[0] - sv[0:1, :]
    dy = x_sm[2] - sv[1:2, :]
    dz = x_sm[4] - sv[2:3, :]
    h_full = jnp.sqrt(dx * dx + dy * dy + dz * dz) + x_sm[6]    # (1, n_pad)

    # --- MLP path: one packed slab (weights + x row), static slices ---
    slab = slab_ref[...]                            # (12 + 2*dm, n_pad)
    w1 = slab[0:8, 0:dm]                            # (8, dm)
    b1 = slab[8:9, 0:dm]                            # (1, dm)
    w2 = slab[9:9 + dm, 0:dm]                       # (dm, dm)
    b2 = slab[9 + dm:10 + dm, 0:dm]                 # (1, dm)
    w3 = slab[10 + dm:10 + 2 * dm, :]               # (dm, n_pad), zero-padded cols
    b3 = slab[10 + 2 * dm:11 + 2 * dm, :]           # (1, n_pad), zero-padded cols
    x_row = slab[11 + 2 * dm:12 + 2 * dm, 0:8]      # (1, 8) state vector row

    a = jnp.maximum(jnp.dot(x_row, w1, preferred_element_type=jnp.float32) + b1, 0.0)
    a = jnp.maximum(jnp.dot(a, w2, preferred_element_type=jnp.float32) + b2, 0.0)
    w_out = jnp.dot(a, w3, preferred_element_type=jnp.float32) + b3    # (1, n_pad)

    o_ref[...] = (h_full + w_out).astype(o_ref.dtype)   # single full-lane store


def init_observation_params(key, dim_measurement: int = 8, trainable: bool = False):
    """Mirror of the PyTorch __init__. Weights returned as (in, out); biases zero."""
    if not trainable:
        return None
    dm = dim_measurement

    def kaiming_t(k, fan_in, fan_out):
        std = (2.0 / fan_in) ** 0.5                 # kaiming_normal_, fan_in / relu gain
        w = jax.random.normal(k, (fan_out, fan_in), jnp.float32) * std * 1e-30
        return w.T                                  # (in, out) for x @ W

    k1, k2, k3 = jax.random.split(key, 3)
    return dict(w1=kaiming_t(k1, 8, dm),  b1=jnp.zeros((1, dm), jnp.float32),
                w2=kaiming_t(k2, dm, dm), b2=jnp.zeros((1, dm), jnp.float32),
                w3=kaiming_t(k3, dm, dm), b3=jnp.zeros((1, dm), jnp.float32))


def _pack_slab(params, x, dm: int, n_pad: int):
    """Pack w1|b1|w2|b2|w3|b3|x into one (12+2*dm, n_pad) f32 slab (single DMA)."""
    slab = jnp.zeros((12 + 2 * dm, n_pad), jnp.float32)
    slab = slab.at[0:8, 0:dm].set(params["w1"])
    slab = slab.at[8, 0:dm].set(params["b1"].reshape(dm))
    slab = slab.at[9:9 + dm, 0:dm].set(params["w2"])
    slab = slab.at[9 + dm, 0:dm].set(params["b2"].reshape(dm))
    slab = slab.at[10 + dm:10 + 2 * dm, 0:dm].set(params["w3"])
    slab = slab.at[10 + 2 * dm, 0:dm].set(params["b3"].reshape(dm))
    slab = slab.at[11 + 2 * dm, 0:8].set(x)
    return slab


def observation_model(x, sv_pos, params=None, dim_measurement: int = 8):
    """x: (8,) f32 state, sv_pos: (n, 3) f32 satellite positions -> (n,) f32."""
    n = sv_pos.shape[0]
    n_pad = max(_LANES, ((n + _LANES - 1) // _LANES) * _LANES)

    x = x.astype(jnp.float32).reshape(8)
    svT = jnp.zeros((3, n_pad), jnp.float32).at[:, :n].set(
        jnp.transpose(sv_pos.astype(jnp.float32)))

    smem = pl.BlockSpec(memory_space=pltpu.MemorySpace.SMEM)
    vmem = pl.BlockSpec(memory_space=pltpu.MemorySpace.VMEM)

    if params is None:
        out = pl.pallas_call(
            _obs_kernel,
            out_shape=jax.ShapeDtypeStruct((1, n_pad), jnp.float32),
            in_specs=[smem, vmem],
            out_specs=vmem,
        )(x, svT)
    else:
        dm = dim_measurement
        if n != dm:
            # Same implicit requirement as the PyTorch module: (n,) + (dm,) broadcast.
            raise ValueError(f"trainable model requires n == dim_measurement ({n} != {dm})")
        slab = _pack_slab(params, x, dm, n_pad)
        out = pl.pallas_call(
            functools.partial(_obs_kernel_train, dm),
            out_shape=jax.ShapeDtypeStruct((1, n_pad), jnp.float32),
            in_specs=[smem, vmem, vmem],
            out_specs=vmem,
        )(x, svT, slab)

    return out[0, :n]


def _reference(x, sv_pos, params):
    pos = x[jnp.array([0, 2, 4])]
    h_val = jnp.linalg.norm(pos[None, :] - sv_pos, axis=1) + x[6]
    if params is None:
        return h_val
    a = jnp.maximum(x[None, :] @ params["w1"] + params["b1"], 0.0)
    a = jnp.maximum(a @ params["w2"] + params["b2"], 0.0)
    a = a @ params["w3"] + params["b3"]
    return h_val + a[0]


if __name__ == "__main__":
    key = jax.random.PRNGKey(0)
    kx, ks, kp = jax.random.split(key, 3)

    x = jax.random.normal(kx, (8,), jnp.float32) * 10.0
    ok = True

    # Non-trainable: arbitrary n (exercises lane padding / slicing).
    for n in (5, 8):
        kn = jax.random.fold_in(ks, n)
        sv_pos = jax.random.normal(kn, (n, 3), jnp.float32) * 100.0 + 50.0
        out = observation_model(x, sv_pos, params=None)
        jax.block_until_ready(out)
        ref = _reference(x, sv_pos, None)
        ok &= bool(np.allclose(np.asarray(out), np.asarray(ref), rtol=1e-5, atol=1e-5))

    # Trainable: n must equal dim_measurement (as in the PyTorch broadcast).
    dm = 8
    sv_pos = jax.random.normal(ks, (dm, 3), jnp.float32) * 100.0 + 50.0
    params = init_observation_params(kp, dim_measurement=dm, trainable=True)
    out = observation_model(x, sv_pos, params=params, dim_measurement=dm)
    jax.block_until_ready(out)
    ref = _reference(x, sv_pos, params)
    ok &= bool(np.allclose(np.asarray(out), np.asarray(ref), rtol=1e-5, atol=1e-5))

    print("KERNEL_OK" if ok else "KERNEL_MISMATCH")
</pallas_src>

<mosaic_0001>
module attributes {stable_mosaic.version = 11 : i64} {
  func.func @_obs_kernel(%arg0: memref<8xf32, #tpu.memory_space<smem>>, %arg1: memref<3x128xf32, #tpu.memory_space<vmem>>, %arg2: memref<1x128xf32, #tpu.memory_space<vmem>>) attributes {dimension_semantics = [], scalar_prefetch = 0 : i64, scratch_operands = 0 : i64, tpu.core_type = #tpu.core_type<tc>} {
    %c0 = arith.constant 0 : index
    %c0_0 = arith.constant 0 : index
    %0 = vector.load %arg1[%c0, %c0_0] : memref<3x128xf32, #tpu.memory_space<vmem>>, vector<3x128xf32>
    %c0_1 = arith.constant 0 : index
    %1 = memref.load %arg0[%c0_1] : memref<8xf32, #tpu.memory_space<smem>>
    %2 = vector.extract_strided_slice %0 {offsets = [0, 0], sizes = [1, 128], strides = [1, 1]} : vector<3x128xf32> to vector<1x128xf32>
    %3 = vector.broadcast %1 : f32 to vector<1x128xf32>
    %4 = arith.subf %3, %2 : vector<1x128xf32>
    %c2 = arith.constant 2 : index
    %5 = memref.load %arg0[%c2] : memref<8xf32, #tpu.memory_space<smem>>
    %6 = vector.extract_strided_slice %0 {offsets = [1, 0], sizes = [1, 128], strides = [1, 1]} : vector<3x128xf32> to vector<1x128xf32>
    %7 = vector.broadcast %5 : f32 to vector<1x128xf32>
    %8 = arith.subf %7, %6 : vector<1x128xf32>
    %c4 = arith.constant 4 : index
    %9 = memref.load %arg0[%c4] : memref<8xf32, #tpu.memory_space<smem>>
    %10 = vector.extract_strided_slice %0 {offsets = [2, 0], sizes = [1, 128], strides = [1, 1]} : vector<3x128xf32> to vector<1x128xf32>
    %11 = vector.broadcast %9 : f32 to vector<1x128xf32>
    %12 = arith.subf %11, %10 : vector<1x128xf32>
    %13 = arith.mulf %4, %4 : vector<1x128xf32>
    %14 = arith.mulf %8, %8 : vector<1x128xf32>
    %15 = arith.addf %13, %14 : vector<1x128xf32>
    %16 = arith.mulf %12, %12 : vector<1x128xf32>
    %17 = arith.addf %15, %16 : vector<1x128xf32>
    %18 = math.sqrt %17 : vector<1x128xf32>
    %c6 = arith.constant 6 : index
    %19 = memref.load %arg0[%c6] : memref<8xf32, #tpu.memory_space<smem>>
    %20 = vector.broadcast %19 : f32 to vector<1x128xf32>
    %21 = arith.addf %18, %20 : vector<1x128xf32>
    %c0_2 = arith.constant 0 : index
    %c0_3 = arith.constant 0 : index
    %22 = vector.load %arg2[%c0_2, %c0_3] : memref<1x128xf32, #tpu.memory_space<vmem>>, vector<1x128xf32>
    tpu.vector_store %arg2[%c0_2, %c0_3], %21 {strides = array<i32>} : memref<1x128xf32, #tpu.memory_space<vmem>>, vector<1x128xf32>,
    return
  }
}

</mosaic_0001>

<llo_original>
// kernel: tpu_custom_call.1
$region0: #{tpu_custom_call.1}
  #allocation0 [shape = 'u32[]', space=smem, size = 0x4, offset = 0x4, fixed_abs, tag = 'smem constant byte address 0x4 - core index']
  #allocation1 [shape = 'u32[144,128]{1,0:T(1,128)}', space=vmem, size = 0x12000, scoped, tag = 'internal scratch']
  %s0 = inlined_call_operand.hbm [shape: f32[8], index: 0, kind: input, shape index: {}]
  %s1 = inlined_call_operand.hbm [shape: f32[3,128], index: 1, kind: input, shape index: {}]
  %s2 = inlined_call_operand.hbm [shape: f32[1,128], index: 2, kind: output, shape index: {}]
  %s3 = sld [smem:[#allocation0]]
  $region26: #{tpu_custom_call.1} parent=0
    _
  %s5 = ssub.s32 1, %s3
  %s6 = scalar_select 0, %s5, %s3
  $region1: #{tpu_custom_call.1} parent=0
    #allocation2 [shape = 'u8[512]{0}', space=smem, size = 0x200, scoped, tag = 'input window, operand 0, single buffered']
    #allocation3 [shape = 's32[1]{0}', space=sflag, size = 0x4, scoped, tag = 'scoped memory for tpu_custom_call.1']
    #allocation4 [shape = 's32[1]{0}', space=sflag, size = 0x4, scoped, tag = 'scoped memory for tpu_custom_call.1']
    #allocation5 [shape = 's32[1]{0}', space=sflag, size = 0x4, scoped, tag = 'scoped memory for tpu_custom_call.1']
    #allocation6 [shape = 'u8[2048]{0}', space=vmem, size = 0x800, scoped, tag = 'input window, operand 1, single buffered']
    #allocation7 [shape = 'u8[512]{0}', space=vmem, size = 0x400, scoped, tag = 'output window, operand 0, single buffered']
    %7 = vsyncpa [#allocation5], 0
    %8 = vsyncpa [#allocation3], 0
    %9 = vsyncpa [#allocation4], 0
    // Predicated region
    $region2: #{tpu_custom_call.1} parent=1 // pred_check
      _
    $region3: #{tpu_custom_call.1} parent=1 // pred_check_branch
      %11 = sbr.rel (0) target = $region5
    $region4: #{tpu_custom_call.1} parent=1 // pred_region
      %s13 = ssub.s32 16, 16
      %14 = vsyncadd [#allocation5], %s13
      %17 = dma.hbm_to_smem %s0, 16, [#allocation2], [#allocation5]
    $region5: #{tpu_custom_call.1} parent=1 // pred_fallthru
      _
    // Predicated region
    $region6: #{tpu_custom_call.1} parent=1 // pred_check
      _
    $region7: #{tpu_custom_call.1} parent=1 // pred_check_branch
      %19 = sbr.rel (0) target = $region9
    $region8: #{tpu_custom_call.1} parent=1 // pred_region
      %s21 = ssub.s32 64, 64
      %22 = vsyncadd [#allocation3], %s21
      %s24 = sshll.u32 [#allocation6], 4
      %s25 = int_to_ptr.vmem [resolvable:$true] %s24
      %27 = dma.hbm_to_vmem [thread:$0]  %s1, 64, %s25, [#allocation3]
    $region9: #{tpu_custom_call.1} parent=1 // pred_fallthru
      _
    // Predicated region
    $region10: #{tpu_custom_call.1} parent=1 // pred_check
      _
    $region11: #{tpu_custom_call.1} parent=1 // pred_check_branch
      %29 = sbr.rel (0) target = $region13
    $region12: #{tpu_custom_call.1} parent=1 // pred_region
      %30 = dma.done [#allocation5], 16
    $region13: #{tpu_custom_call.1} parent=1 // pred_fallthru
      _
    // Predicated region
    $region14: #{tpu_custom_call.1} parent=1 // pred_check
      _
    $region15: #{tpu_custom_call.1} parent=1 // pred_check_branch
      %32 = sbr.rel (0) target = $region17
    $region16: #{tpu_custom_call.1} parent=1 // pred_region
      %33 = dma.done [#allocation3], 64
    $region17: #{tpu_custom_call.1} parent=1 // pred_fallthru
      _
    %34 = sfence
    %v35 = vld [vmem:[#allocation6] sm:$0x7]
    %s36 = sld [smem:[#allocation2]]
    %v37 = vstv %s36
    %v38 = vsub.f32 %v37, %v35
    %s39 = sld [smem:[#allocation2 + $0x2]]
    %v40 = vstv %s39
    %v41 = vsub.f32 %v40, %v35
    %s42 = sld [smem:[#allocation2 + $0x4]]
    %v43 = vstv %s42
    %v44 = vsub.f32 %v43, %v35
    %v45 = vmul.f32 %v38, %v38
    %v46 = vmul.f32 %v41, %v41
    %v48 = vrot.slane %v46, 1
    %v50 = vadd.f32 %v45, %v48
    %v51 = vmul.f32 %v44, %v44
    %v53 = vrot.slane %v51, 2
    %v55 = vadd.f32 %v50, %v53
    %v56 = vrsqrt.pop %v55
    %v57 = vmul.f32 %v55, %v56
    %vm58 = vcmp.eq.f32.partialorder %v55, inf
    %v59 = vsel %vm58, %v55, %v57
    %vm60 = vcmp.eq.f32.partialorder %v55, 0.0
    %v61 = vand.u32 %v55, 2147483648
    %v62 = vsel %vm60, %v61, %v59
    %s63 = sld [smem:[#allocation2 + $0x6]]
    %v64 = vstv %s63
    %v65 = vadd.f32 %v62, %v64
    %66 = vst [vmem:[#allocation7] sm:$0x1] %v65
    // Predicated region
    $region18: #{tpu_custom_call.1} parent=1 // pred_check
      _
    $region19: #{tpu_custom_call.1} parent=1 // pred_check_branch
      %68 = sbr.rel (0) target = $region21
    $region20: #{tpu_custom_call.1} parent=1 // pred_region
      %s70 = ssub.s32 16, 16
      %71 = vsyncadd [#allocation4], %s70
      %s73 = sshll.u32 [#allocation7], 4
      %s74 = int_to_ptr.vmem [resolvable:$true] %s73
      %76 = dma.vmem_to_hbm [thread:$0]  %s74, 16, %s2, [#allocation4]
    $region21: #{tpu_custom_call.1} parent=1 // pred_fallthru
      _
    // Predicated region
    $region22: #{tpu_custom_call.1} parent=1 // pred_check
      _
    $region23: #{tpu_custom_call.1} parent=1 // pred_check_branch
      %78 = sbr.rel (0) target = $region25
    $region24: #{tpu_custom_call.1} parent=1 // pred_region
      %79 = dma.done [#allocation4], 16
    $region25: #{tpu_custom_call.1} parent=1 // pred_fallthru
      _
    %80 = vsyncpa [#allocation3], 1
    %81 = vsyncpa [#allocation4], 1
    %82 = vsyncpa [#allocation5], 1

</llo_original>
